<compile_context>
chip_gen: v6e
topology: v6e:2x2x1
jax: 0.10.0
libtpu: 0.0.40
codegen_flags: <defaults>
</compile_context>

<pallas_src>
import functools

import jax
import jax.numpy as jnp
from jax.experimental import pallas as pl
from jax.experimental.pallas import tpu as pltpu


# ---------------------------------------------------------------------------
# Stage 1: QKV projection.  One uniform GEMM step per (sample, token tile).
#   q_out  = x @ (Wq*scale) + bq*scale   -> (B, N, D) bf16
#   kt_out = (x @ Wk + bk)^T             -> (B, D, N) bf16 (lane-dense N)
#   v_out  = x @ Wv + bv                 -> (B, N, D) bf16
# ---------------------------------------------------------------------------
def _qkv_kernel(x_ref, wq_ref, wk_ref, wv_ref, bq_ref, bk_ref, bv_ref,
                q_ref, kt_ref, v_ref):
    xb = x_ref[0]                                                   # (TN, D) bf16
    q = jnp.dot(xb, wq_ref[...], preferred_element_type=jnp.float32) + bq_ref[0]
    k = jnp.dot(xb, wk_ref[...], preferred_element_type=jnp.float32) + bk_ref[0]
    v = jnp.dot(xb, wv_ref[...], preferred_element_type=jnp.float32) + bv_ref[0]
    q_ref[0] = q.astype(q_ref.dtype)                                # (TN, D)
    kt_ref[0] = k.T.astype(kt_ref.dtype)                            # (D, TN)
    v_ref[0] = v.astype(v_ref.dtype)                                # (TN, D)


# ---------------------------------------------------------------------------
# Stage 2: per-head attention + output projection for one query tile.
# ---------------------------------------------------------------------------
def _attn_kernel(n_heads, head_dim, q_ref, kt_ref, v_ref, wp_ref, bp_ref, o_ref):
    outs = []
    for h in range(n_heads):                                        # static unroll
        lo = h * head_dim
        q_h = q_ref[0, :, lo:lo + head_dim]                         # (TQ, hd) bf16
        kt_h = kt_ref[0, lo:lo + head_dim, :]                       # (hd, N)  bf16 (sublane slice)
        s = jnp.dot(q_h, kt_h, preferred_element_type=jnp.float32)  # (TQ, N)  f32
        m = jnp.max(s, axis=-1, keepdims=True)
        e = jnp.exp(s - m)
        denom = jnp.sum(e, axis=-1, keepdims=True)
        p = (e * pl.reciprocal(denom, approx=True)).astype(jnp.bfloat16)
        # attn_drop is identity (p = 0)
        v_h = v_ref[0, :, lo:lo + head_dim]                         # (N, hd) bf16
        o_h = jnp.dot(p, v_h, preferred_element_type=jnp.float32)   # (TQ, hd) f32
        outs.append(o_h.astype(jnp.bfloat16))
    # transpose(1,2).flatten(2): heads merged back along the feature axis.
    wa = jnp.concatenate(outs, axis=-1)                             # (TQ, D) bf16
    out = jnp.dot(wa, wp_ref[...], preferred_element_type=jnp.float32) + bp_ref[0]
    # proj_drop is identity (p = 0)
    o_ref[0] = out.astype(o_ref.dtype)


# ---------------------------------------------------------------------------
# Generation-aware tiling / VMEM budget.
# ---------------------------------------------------------------------------
def _tpu_params():
    """Returns (query-tile preference, vmem_limit_bytes) for this TPU gen."""
    kind = ""
    try:
        kind = jax.devices()[0].device_kind.lower()
    except Exception:
        pass
    vmem_cap = None
    try:
        vmem_cap = int(pltpu.get_tpu_info().vmem_capacity_bytes)
    except Exception:
        vmem_cap = None
    if vmem_cap is None:
        # v7x has 64 MiB per TensorCore; v5e/v6e have 128 MiB.
        vmem_cap = (64 if "v7" in kind else 128) * 1024 * 1024
    vmem_limit = min(vmem_cap * 85 // 100, 110 * 1024 * 1024)
    # v4/v5 MXUs are 128-wide, so 128 query rows already saturate M;
    # v6e/v7x MXUs are 256-wide -> prefer 256-row tiles.
    tq_pref = 128 if ("v5" in kind or "v4" in kind) else 256
    return tq_pref, vmem_limit


def _pick_tile(n_tokens, pref):
    """Largest lane-aligned (multiple-of-128) token tile dividing n_tokens."""
    for t in (pref, 256, 128):
        if t <= n_tokens and n_tokens % t == 0:
            return t
    return n_tokens    # full extent (small or non-128-divisible N is still safe
                       # because the softmax working set is per-head only)


# ---------------------------------------------------------------------------
# Wrapper.
# ---------------------------------------------------------------------------
def attention_pallas(x, w_qkv, b_qkv, w_proj, b_proj, n_heads):
    """x: (B, N, D).  w_qkv: (D, 3D), b_qkv: (3D,), w_proj: (D, D), b_proj: (D,)
    (weights pre-transposed to (in_features, out_features), so y = x @ W + b)."""
    B, N, D = x.shape
    assert D % n_heads == 0
    hd = D // n_heads
    scale = hd ** (-0.5)

    tq_pref, vmem_limit = _tpu_params()
    tn = _pick_tile(N, tq_pref)
    nt = N // tn

    # bf16 MXU inputs; scale folded into the Q projection; biases stay f32.
    xb = x.astype(jnp.bfloat16)
    wq = (w_qkv[:, :D] * scale).astype(jnp.bfloat16)
    wk = w_qkv[:, D:2 * D].astype(jnp.bfloat16)
    wv = w_qkv[:, 2 * D:].astype(jnp.bfloat16)
    wp = w_proj.astype(jnp.bfloat16)
    bq = (b_qkv[:D] * scale).reshape(1, D).astype(jnp.float32)
    bk = b_qkv[D:2 * D].reshape(1, D).astype(jnp.float32)
    bv = b_qkv[2 * D:].reshape(1, D).astype(jnp.float32)
    bp = b_proj.reshape(1, D).astype(jnp.float32)

    # Whole-array VMEM residency for weights/biases (grid-invariant, one copy).
    resident = pl.BlockSpec(memory_space=pltpu.MemorySpace.VMEM)
    cparams = pltpu.CompilerParams(
        dimension_semantics=("parallel", "parallel"),
        vmem_limit_bytes=vmem_limit,
    )

    # ---- Stage 1: QKV projection -> bf16 Q (pre-scaled), K^T, V in HBM -----
    q_s, k_t, v_s = pl.pallas_call(
        _qkv_kernel,
        out_shape=(
            jax.ShapeDtypeStruct((B, N, D), jnp.bfloat16),      # Q * scale
            jax.ShapeDtypeStruct((B, D, N), jnp.bfloat16),      # K^T
            jax.ShapeDtypeStruct((B, N, D), jnp.bfloat16),      # V
        ),
        grid_spec=pltpu.PrefetchScalarGridSpec(
            num_scalar_prefetch=0,
            grid=(B, nt),
            in_specs=[
                pl.BlockSpec((1, tn, D), lambda b, j: (b, j, 0)),   # x tile
                resident, resident, resident,                       # wq, wk, wv
                resident, resident, resident,                       # bq, bk, bv
            ],
            out_specs=[
                pl.BlockSpec((1, tn, D), lambda b, j: (b, j, 0)),
                pl.BlockSpec((1, D, tn), lambda b, j: (b, 0, j)),
                pl.BlockSpec((1, tn, D), lambda b, j: (b, j, 0)),
            ],
        ),
        compiler_params=cparams,
    )(xb, wq, wk, wv, bq, bk, bv)

    # ---- Stage 2: per-head attention + output projection --------------------
    attn_kernel = functools.partial(_attn_kernel, n_heads, hd)
    return pl.pallas_call(
        attn_kernel,
        out_shape=jax.ShapeDtypeStruct((B, N, D), x.dtype),
        grid_spec=pltpu.PrefetchScalarGridSpec(
            num_scalar_prefetch=0,
            grid=(B, nt),
            in_specs=[
                pl.BlockSpec((1, tn, D), lambda b, j: (b, j, 0)),   # Q tile
                pl.BlockSpec((1, D, N), lambda b, j: (b, 0, 0)),    # K^T (whole sample,
                pl.BlockSpec((1, N, D), lambda b, j: (b, 0, 0)),    # V    resident over j)
                resident, resident,                                  # wp, bp
            ],
            out_specs=pl.BlockSpec((1, tn, D), lambda b, j: (b, j, 0)),
        ),
        compiler_params=cparams,
    )(q_s, k_t, v_s, wp, bp)


def attention_reference(x, w_qkv, b_qkv, w_proj, b_proj, n_heads):
    """Pure-JAX f32 reference mirroring the PyTorch forward."""
    B, N, D = x.shape
    hd = D // n_heads
    scale = hd ** (-0.5)
    qkv = jnp.einsum('bnd,de->bne', x, w_qkv) + b_qkv                 # (B, N, 3D)
    qkv = qkv.reshape(B, N, 3, n_heads, hd).transpose(2, 0, 3, 1, 4)
    q, k, v = qkv[0], qkv[1], qkv[2]                                  # (B, H, N, hd)
    dp = jnp.einsum('bhnd,bhmd->bhnm', q, k) * scale
    attn = jax.nn.softmax(dp, axis=-1)
    wa = jnp.einsum('bhnm,bhmd->bhnd', attn, v)                       # (B, H, N, hd)
    wa = wa.transpose(0, 2, 1, 3).reshape(B, N, D)
    return jnp.einsum('bnd,de->bne', wa, w_proj) + b_proj


if __name__ == "__main__":
    # Small shapes consistent with the module: dim divisible by n_heads.
    B, N, D, H = 2, 8, 32, 4

    key = jax.random.PRNGKey(0)
    kx, kw1, kb1, kw2, kb2 = jax.random.split(key, 5)

    x = jax.random.normal(kx, (B, N, D), dtype=jnp.float32)
    # Deterministic synthetic parameters (pre-transposed: (in, out)).
    w_qkv = jax.random.normal(kw1, (D, 3 * D), dtype=jnp.float32) * 0.05
    b_qkv = jax.random.normal(kb1, (3 * D,), dtype=jnp.float32) * 0.05
    w_proj = jax.random.normal(kw2, (D, D), dtype=jnp.float32) * 0.05
    b_proj = jax.random.normal(kb2, (D,), dtype=jnp.float32) * 0.05

    out = attention_pallas(x, w_qkv, b_qkv, w_proj, b_proj, H)
    out = jax.block_until_ready(out)

    ref = attention_reference(x, w_qkv, b_qkv, w_proj, b_proj, H)
    assert out.shape == (B, N, D)
    # bf16 matmul inputs + approx reciprocal -> slightly looser tolerance than f32.
    assert jnp.allclose(out, ref, atol=2e-2, rtol=2e-2), float(jnp.max(jnp.abs(out - ref)))

    print("KERNEL_OK")
</pallas_src>

<mosaic_0001>
module attributes {stable_mosaic.version = 11 : i64} {
  func.func @_qkv_kernel(%arg0: i32, %arg1: i32, %arg2: memref<1x8x32xbf16, #tpu.memory_space<vmem>>, %arg3: memref<32x32xbf16, #tpu.memory_space<vmem>>, %arg4: memref<32x32xbf16, #tpu.memory_space<vmem>>, %arg5: memref<32x32xbf16, #tpu.memory_space<vmem>>, %arg6: memref<1x32xf32, #tpu.memory_space<vmem>>, %arg7: memref<1x32xf32, #tpu.memory_space<vmem>>, %arg8: memref<1x32xf32, #tpu.memory_space<vmem>>, %arg9: memref<1x8x32xbf16, #tpu.memory_space<vmem>>, %arg10: memref<1x32x8xbf16, #tpu.memory_space<vmem>>, %arg11: memref<1x8x32xbf16, #tpu.memory_space<vmem>>) attributes {dimension_semantics = [#tpu.dimension_semantics<parallel>, #tpu.dimension_semantics<parallel>], iteration_bounds = array<i64: 2, 1>, scalar_prefetch = 0 : i64, scratch_operands = 0 : i64, tpu.core_type = #tpu.core_type<tc>, window_params = [{transform_indices = @transform_0, window_bounds = array<i64: 1, 8, 32>}, {pipeline_mode = #tpu.pipeline_mode<synchronous>, transform_indices = @transform_1, window_bounds = array<i64: 32, 32>}, {pipeline_mode = #tpu.pipeline_mode<synchronous>, transform_indices = @transform_2, window_bounds = array<i64: 32, 32>}, {pipeline_mode = #tpu.pipeline_mode<synchronous>, transform_indices = @transform_3, window_bounds = array<i64: 32, 32>}, {pipeline_mode = #tpu.pipeline_mode<synchronous>, transform_indices = @transform_4, window_bounds = array<i64: 1, 32>}, {pipeline_mode = #tpu.pipeline_mode<synchronous>, transform_indices = @transform_5, window_bounds = array<i64: 1, 32>}, {pipeline_mode = #tpu.pipeline_mode<synchronous>, transform_indices = @transform_6, window_bounds = array<i64: 1, 32>}, {transform_indices = @transform_7, window_bounds = array<i64: 1, 8, 32>}, {transform_indices = @transform_8, window_bounds = array<i64: 1, 32, 8>}, {transform_indices = @transform_9, window_bounds = array<i64: 1, 8, 32>}]} {
    %c0 = arith.constant 0 : index
    %c0_0 = arith.constant 0 : index
    %c0_1 = arith.constant 0 : index
    %0 = vector.load %arg2[%c0, %c0_0, %c0_1] : memref<1x8x32xbf16, #tpu.memory_space<vmem>>, vector<1x8x32xbf16>
    %1 = vector.shape_cast %0 : vector<1x8x32xbf16> to vector<8x32xbf16>
    %c0_2 = arith.constant 0 : index
    %c0_3 = arith.constant 0 : index
    %2 = vector.load %arg3[%c0_2, %c0_3] : memref<32x32xbf16, #tpu.memory_space<vmem>>, vector<32x32xbf16>
    %cst = arith.constant dense<0.000000e+00> : vector<8x32xf32>
    %3 = tpu.matmul %1, %2, %cst {dimension_numbers = #tpu.dot_dimension_numbers<[1], [0], [0], [1], [0, 0, 1, 1], [], []>} : vector<8x32xbf16>, vector<32x32xbf16>, vector<8x32xf32> -> vector<8x32xf32>
    %c0_4 = arith.constant 0 : index
    %c0_5 = arith.constant 0 : index
    %4 = vector.load %arg6[%c0_4, %c0_5] : memref<1x32xf32, #tpu.memory_space<vmem>>, vector<1x32xf32>
    %5 = vector.shape_cast %4 : vector<1x32xf32> to vector<32xf32>
    %6 = vector.shape_cast %5 : vector<32xf32> to vector<1x32xf32>
    %7 = vector.broadcast %6 : vector<1x32xf32> to vector<8x32xf32>
    %8 = arith.addf %3, %7 : vector<8x32xf32>
    %c0_6 = arith.constant 0 : index
    %c0_7 = arith.constant 0 : index
    %9 = vector.load %arg4[%c0_6, %c0_7] : memref<32x32xbf16, #tpu.memory_space<vmem>>, vector<32x32xbf16>
    %cst_8 = arith.constant dense<0.000000e+00> : vector<8x32xf32>
    %10 = tpu.matmul %1, %9, %cst_8 {dimension_numbers = #tpu.dot_dimension_numbers<[1], [0], [0], [1], [0, 0, 1, 1], [], []>} : vector<8x32xbf16>, vector<32x32xbf16>, vector<8x32xf32> -> vector<8x32xf32>
    %c0_9 = arith.constant 0 : index
    %c0_10 = arith.constant 0 : index
    %11 = vector.load %arg7[%c0_9, %c0_10] : memref<1x32xf32, #tpu.memory_space<vmem>>, vector<1x32xf32>
    %12 = vector.shape_cast %11 : vector<1x32xf32> to vector<32xf32>
    %13 = vector.shape_cast %12 : vector<32xf32> to vector<1x32xf32>
    %14 = vector.broadcast %13 : vector<1x32xf32> to vector<8x32xf32>
    %15 = arith.addf %10, %14 : vector<8x32xf32>
    %c0_11 = arith.constant 0 : index
    %c0_12 = arith.constant 0 : index
    %16 = vector.load %arg5[%c0_11, %c0_12] : memref<32x32xbf16, #tpu.memory_space<vmem>>, vector<32x32xbf16>
    %cst_13 = arith.constant dense<0.000000e+00> : vector<8x32xf32>
    %17 = tpu.matmul %1, %16, %cst_13 {dimension_numbers = #tpu.dot_dimension_numbers<[1], [0], [0], [1], [0, 0, 1, 1], [], []>} : vector<8x32xbf16>, vector<32x32xbf16>, vector<8x32xf32> -> vector<8x32xf32>
    %c0_14 = arith.constant 0 : index
    %c0_15 = arith.constant 0 : index
    %18 = vector.load %arg8[%c0_14, %c0_15] : memref<1x32xf32, #tpu.memory_space<vmem>>, vector<1x32xf32>
    %19 = vector.shape_cast %18 : vector<1x32xf32> to vector<32xf32>
    %20 = vector.shape_cast %19 : vector<32xf32> to vector<1x32xf32>
    %21 = vector.broadcast %20 : vector<1x32xf32> to vector<8x32xf32>
    %22 = arith.addf %17, %21 : vector<8x32xf32>
    %23 = arith.truncf %8 : vector<8x32xf32> to vector<8x32xbf16>
    %c0_16 = arith.constant 0 : index
    %c0_17 = arith.constant 0 : index
    %c0_18 = arith.constant 0 : index
    %24 = vector.load %arg9[%c0_16, %c0_17, %c0_18] : memref<1x8x32xbf16, #tpu.memory_space<vmem>>, vector<1x8x32xbf16>
    %25 = vector.shape_cast %24 : vector<1x8x32xbf16> to vector<8x32xbf16>
    %26 = vector.shape_cast %23 : vector<8x32xbf16> to vector<1x8x32xbf16>
    tpu.vector_store %arg9[%c0_16, %c0_17, %c0_18], %26 {strides = array<i32>} : memref<1x8x32xbf16, #tpu.memory_space<vmem>>, vector<1x8x32xbf16>,
    %27 = tpu.transpose %15, [1, 0] : vector<8x32xf32> -> vector<32x8xf32>
    %28 = arith.truncf %27 : vector<32x8xf32> to vector<32x8xbf16>
    %c0_19 = arith.constant 0 : index
    %c0_20 = arith.constant 0 : index
    %c0_21 = arith.constant 0 : index
    %29 = vector.load %arg10[%c0_19, %c0_20, %c0_21] : memref<1x32x8xbf16, #tpu.memory_space<vmem>>, vector<1x32x8xbf16>
    %30 = vector.shape_cast %29 : vector<1x32x8xbf16> to vector<32x8xbf16>
    %31 = vector.shape_cast %28 : vector<32x8xbf16> to vector<1x32x8xbf16>
    tpu.vector_store %arg10[%c0_19, %c0_20, %c0_21], %31 {strides = array<i32>} : memref<1x32x8xbf16, #tpu.memory_space<vmem>>, vector<1x32x8xbf16>,
    %32 = arith.truncf %22 : vector<8x32xf32> to vector<8x32xbf16>
    %c0_22 = arith.constant 0 : index
    %c0_23 = arith.constant 0 : index
    %c0_24 = arith.constant 0 : index
    %33 = vector.load %arg11[%c0_22, %c0_23, %c0_24] : memref<1x8x32xbf16, #tpu.memory_space<vmem>>, vector<1x8x32xbf16>
    %34 = vector.shape_cast %33 : vector<1x8x32xbf16> to vector<8x32xbf16>
    %35 = vector.shape_cast %32 : vector<8x32xbf16> to vector<1x8x32xbf16>
    tpu.vector_store %arg11[%c0_22, %c0_23, %c0_24], %35 {strides = array<i32>} : memref<1x8x32xbf16, #tpu.memory_space<vmem>>, vector<1x8x32xbf16>,
    return
  }
  func.func @transform_0(%arg0: i32, %arg1: i32) -> (i32, i32, i32) {
    %c0_i32 = arith.constant 0 : i32
    %c0_i32_0 = arith.constant 0 : i32
    return %arg0, %arg1, %c0_i32 : i32, i32, i32
  }
  func.func @transform_1(%arg0: i32, %arg1: i32) -> (i32, i32) {
    %c0_i32 = arith.constant 0 : i32
    %c0_i32_0 = arith.constant 0 : i32
    %c0_i32_1 = arith.constant 0 : i32
    return %c0_i32, %c0_i32_0 : i32, i32
  }
  func.func @transform_2(%arg0: i32, %arg1: i32) -> (i32, i32) {
    %c0_i32 = arith.constant 0 : i32
    %c0_i32_0 = arith.constant 0 : i32
    %c0_i32_1 = arith.constant 0 : i32
    return %c0_i32, %c0_i32_0 : i32, i32
  }
  func.func @transform_3(%arg0: i32, %arg1: i32) -> (i32, i32) {
    %c0_i32 = arith.constant 0 : i32
    %c0_i32_0 = arith.constant 0 : i32
    %c0_i32_1 = arith.constant 0 : i32
    return %c0_i32, %c0_i32_0 : i32, i32
  }
  func.func @transform_4(%arg0: i32, %arg1: i32) -> (i32, i32) {
    %c0_i32 = arith.constant 0 : i32
    %c0_i32_0 = arith.constant 0 : i32
    %c0_i32_1 = arith.constant 0 : i32
    return %c0_i32, %c0_i32_0 : i32, i32
  }
  func.func @transform_5(%arg0: i32, %arg1: i32) -> (i32, i32) {
    %c0_i32 = arith.constant 0 : i32
    %c0_i32_0 = arith.constant 0 : i32
    %c0_i32_1 = arith.constant 0 : i32
    return %c0_i32, %c0_i32_0 : i32, i32
  }
  func.func @transform_6(%arg0: i32, %arg1: i32) -> (i32, i32) {
    %c0_i32 = arith.constant 0 : i32
    %c0_i32_0 = arith.constant 0 : i32
    %c0_i32_1 = arith.constant 0 : i32
    return %c0_i32, %c0_i32_0 : i32, i32
  }
  func.func @transform_7(%arg0: i32, %arg1: i32) -> (i32, i32, i32) {
    %c0_i32 = arith.constant 0 : i32
    %c0_i32_0 = arith.constant 0 : i32
    return %arg0, %arg1, %c0_i32 : i32, i32, i32
  }
  func.func @transform_8(%arg0: i32, %arg1: i32) -> (i32, i32, i32) {
    %c0_i32 = arith.constant 0 : i32
    %c0_i32_0 = arith.constant 0 : i32
    return %arg0, %c0_i32, %arg1 : i32, i32, i32
  }
  func.func @transform_9(%arg0: i32, %arg1: i32) -> (i32, i32, i32) {
    %c0_i32 = arith.constant 0 : i32
    %c0_i32_0 = arith.constant 0 : i32
    return %arg0, %arg1, %c0_i32 : i32, i32, i32
  }
}

</mosaic_0001>

<llo_original>
// kernel: tpu_custom_call.1
$region0: #{tpu_custom_call.1}
  #allocation0 [shape = 'u32[]', space=smem, size = 0x4, offset = 0x4, fixed_abs, tag = 'smem constant byte address 0x4 - core index']
  #allocation1 [shape = 'u32[144,128]{1,0:T(1,128)}', space=vmem, size = 0x12000, scoped, tag = 'internal scratch']
  %s0 = inlined_call_operand.hbm [shape: bf16[2,8,32], index: 0, kind: input, shape index: {}]
  %s1 = inlined_call_operand.hbm [shape: bf16[32,32], index: 1, kind: input, shape index: {}]
  %s2 = inlined_call_operand.hbm [shape: bf16[32,32], index: 2, kind: input, shape index: {}]
  %s3 = inlined_call_operand.hbm [shape: bf16[32,32], index: 3, kind: input, shape index: {}]
  %s4 = inlined_call_operand.vmem [shape: f32[1,32], index: 4, kind: input, shape index: {}]
  %s5 = inlined_call_operand.vmem [shape: f32[1,32], index: 5, kind: input, shape index: {}]
  %s6 = inlined_call_operand.vmem [shape: f32[1,32], index: 6, kind: input, shape index: {}]
  %s7 = inlined_call_operand.hbm [shape: bf16[2,8,32], index: 7, kind: output, shape index: {0}]
  %s8 = inlined_call_operand.vmem [shape: bf16[2,32,8], index: 8, kind: output, shape index: {1}]
  %s9 = inlined_call_operand.hbm [shape: bf16[2,8,32], index: 9, kind: output, shape index: {2}]
  %10 = xla_tuple %s7, %s8, %s9
  %s11 = sld [smem:[#allocation0]]
  $region93: #{tpu_custom_call.1} parent=0
    _
  %s13 = ssub.s32 1, %s11
  %s14 = scalar_select 0, %s13, %s11
  $region1: #{tpu_custom_call.1} parent=0
    #allocation2 [shape = 'u8[4096]{0}', space=vmem, size = 0x1000, scoped, tag = 'input window, operand 0']
    #allocation3 [shape = 's32[2]{0}', space=sflag, size = 0x8, scoped, tag = 'scoped memory for tpu_custom_call.1']
    #allocation4 [shape = 's32[2]{0}', space=sflag, size = 0x8, scoped, tag = 'scoped memory for tpu_custom_call.1']
    #allocation5 [shape = 'u8[8192]{0}', space=vmem, size = 0x2000, scoped, tag = 'input window, operand 1, single buffered']
    #allocation6 [shape = 's32[1]{0}', space=sflag, size = 0x4, scoped, tag = 'scoped memory for tpu_custom_call.1']
    #allocation7 [shape = 'u8[8192]{0}', space=vmem, size = 0x2000, scoped, tag = 'input window, operand 2, single buffered']
    #allocation8 [shape = 'u8[8192]{0}', space=vmem, size = 0x2000, scoped, tag = 'input window, operand 3, single buffered']
    #allocation9 [shape = 's32[1]{0}', space=sflag, size = 0x4, scoped, tag = 'scoped memory for tpu_custom_call.1']
    #allocation10 [shape = 'u8[4096]{0}', space=vmem, size = 0x1000, scoped, tag = 'output window, operand 0']
    #allocation11 [shape = 'u8[4096]{0}', space=vmem, size = 0x1000, scoped, tag = 'output window, operand 2']
    #allocation12 [shape = 's32[2]{0}', space=sflag, size = 0x8, scoped, tag = 'scoped memory for tpu_custom_call.1']
    %15 = vsyncpa [#allocation3], 0
    %s16 = scalar_lea.sflag [#allocation3], 1
    %17 = vsyncpa %s16, 0
    %18 = vsyncpa [#allocation6], 0
    %19 = vsyncpa [#allocation9], 0
    %20 = vsyncpa [#allocation4], 0
    %s21 = scalar_lea.sflag [#allocation4], 1
    %22 = vsyncpa %s21, 0
    %23 = vsyncpa [#allocation12], 0
    %s24 = scalar_lea.sflag [#allocation12], 1
    %25 = vsyncpa %s24, 0
    loop: start=0, step=1, limit=4
    $region2: #{tpu_custom_call.1} parent=1 // loop_pre_header
      _
    $region3: #{tpu_custom_call.1} parent=1 // loop_header
      %s27 = sphi 0, %s31
      %p28 = scmp.ge.s32.totalorder %s27, 4
      %s34 = sphi 0, %s46
      %s35 = sphi 0, %s42
      %s36 = sphi 0, %s34
      %s37 = sphi 0, %s35
      %s38 = sphi 0, %s36
      %s39 = sphi 0, %s37
      %s51 = sphi 0, %s53
      %s54 = sphi 0, %s51
      %s55 = sphi 0, %s54
      %s71 = sphi 0, %s55
      %s75 = sphi 0, %s75
      %s77 = sphi 0, %s75
      %s78 = sphi 0, %s77
      %s92 = sphi 0, %s78
      %s96 = sphi 0, %s96
      %s98 = sphi 0, %s96
      %s99 = sphi 0, %s98
      %s113 = sphi 0, %s99
      %s117 = sphi 0, %s117
      %s119 = sphi 0, %s117
      %s120 = sphi 0, %s119
      %s134 = sphi 0, %s120
      %s138 = sphi 0, %s138
      %s140 = sphi 0, %s138
      %s141 = sphi 0, %s140
      %s155 = sphi 0, %s141
      %s159 = sphi 0, %s159
      %s161 = sphi 0, %s159
      %s162 = sphi 0, %s161
      %s176 = sphi 0, %s162
      %s180 = sphi 0, %s180
      %s182 = sphi 0, %s180
      %s183 = sphi 0, %s182
      %s197 = sphi 0, %s183
      %s205 = sphi 0, %s207
      %s208 = sphi 0, %s205
      %s209 = sphi 0, %s208
      %s225 = sphi 0, %s209
      %s233 = sphi 0, %s235
      %s236 = sphi 0, %s233
      %s237 = sphi 0, %s236
      %s253 = sphi 0, %s237
      %s261 = sphi 0, %s263
      %s264 = sphi 0, %s261
      %s265 = sphi 0, %s264
      %s281 = sphi 0, %s265
    $region4: #{tpu_custom_call.1} parent=1 // loop_header_branch
      %30 = sbr.rel (%p28) target = $region8
    $region5: #{tpu_custom_call.1} parent=1 // loop_body
      %s32 = ssub.s32 %s27, 1
      %s33 = ssub.s32 %s27, 2
      %s40 = sadd.s32 1, %s35
      %p41 = scmp.ge.s32.totalorder %s40, 1
      %s42 = scalar_select %p41, 0, %s40
      %s43 = sadd.s32 1, %s34
      %s44 = scalar_select %p41, %s43, %s34
      %p45 = scmp.ge.s32.totalorder %s44, 2
      %s46 = scalar_select %p45, 0, %s44
      %s47 = ssub.s32 %s34, %s46
      %s48 = ssub.s32 %s35, %s42
      %s49 = sor.u32 %s47, %s48
      %p50 = scmp.eq.s32.totalorder %s49, 0
      %s52 = sadd.s32 %s51, 1
      %s53 = scalar_select %p50, %s51, %s52
      %p56 = pneg %p50
      %p57 = scmp.eq.s32.totalorder %s27, 1
      %p58 = por %p56, %p57
      %p59 = scmp.ne.s32.totalorder %s51, %s54
      %p60 = scmp.eq.s32.totalorder %s27, 0
      %p61 = por %p59, %p60
      %p62 = scmp.ne.s32.totalorder %s51, %s54
      %p63 = scmp.eq.s32.totalorder %s32, 1
      %p64 = por %p62, %p63
      %p65 = scmp.ne.s32.totalorder %s54, %s55
      %p66 = scmp.eq.s32.totalorder %s32, 0
      %p67 = por %p65, %p66
      %p68 = scmp.ne.s32.totalorder %s54, %s55
      %p69 = scmp.eq.s32.totalorder %s33, 1
      %p70 = por %p68, %p69
      %p72 = scmp.ne.s32.totalorder %s55, %s71
      %p73 = scmp.eq.s32.totalorder %s33, 0
      %p74 = por %p72, %p73
      %s76 = sadd.s32 %s75, 1
      %p79 = scmp.eq.s32.totalorder %s27, 1
      %p80 = scmp.ne.s32.totalorder %s75, %s77
      %p81 = scmp.eq.s32.totalorder %s27, 0
      %p82 = por %p80, %p81
      %p83 = scmp.ne.s32.totalorder %s75, %s77
      %p84 = scmp.eq.s32.totalorder %s32, 1
      %p85 = por %p83, %p84
      %p86 = scmp.ne.s32.totalorder %s77, %s78
      %p87 = scmp.eq.s32.totalorder %s32, 0
      %p88 = por %p86, %p87
      %p89 = scmp.ne.s32.totalorder %s77, %s78
      %p90 = scmp.eq.s32.totalorder %s33, 1
      %p91 = por %p89, %p90
      %p93 = scmp.ne.s32.totalorder %s78, %s92
      %p94 = scmp.eq.s32.totalorder %s33, 0
      %p95 = por %p93, %p94
      %s97 = sadd.s32 %s96, 1
      %p100 = scmp.eq.s32.totalorder %s27, 1
      %p101 = scmp.ne.s32.totalorder %s96, %s98
      %p102 = scmp.eq.s32.totalorder %s27, 0
      %p103 = por %p101, %p102
      %p104 = scmp.ne.s32.totalorder %s96, %s98
      %p105 = scmp.eq.s32.totalorder %s32, 1
      %p106 = por %p104, %p105
      %p107 = scmp.ne.s32.totalorder %s98, %s99
      %p108 = scmp.eq.s32.totalorder %s32, 0
      %p109 = por %p107, %p108
      %p110 = scmp.ne.s32.totalorder %s98, %s99
      %p111 = scmp.eq.s32.totalorder %s33, 1
      %p112 = por %p110, %p111
      %p114 = scmp.ne.s32.totalorder %s99, %s113
      %p115 = scmp.eq.s32.totalorder %s33, 0
      %p116 = por %p114, %p115
      %s118 = sadd.s32 %s117, 1
      %p121 = scmp.eq.s32.totalorder %s27, 1
      %p122 = scmp.ne.s32.totalorder %s117, %s119
      %p123 = scmp.eq.s32.totalorder %s27, 0
      %p124 = por %p122, %p123
      %p125 = scmp.ne.s32.totalorder %s117, %s119
      %p126 = scmp.eq.s32.totalorder %s32, 1
      %p127 = por %p125, %p126
      %p128 = scmp.ne.s32.totalorder %s119, %s120
      %p129 = scmp.eq.s32.totalorder %s32, 0
      %p130 = por %p128, %p129
      %p131 = scmp.ne.s32.totalorder %s119, %s120
      %p132 = scmp.eq.s32.totalorder %s33, 1
      %p133 = por %p131, %p132
      %p135 = scmp.ne.s32.totalorder %s120, %s134
      %p136 = scmp.eq.s32.totalorder %s33, 0
      %p137 = por %p135, %p136
      %s139 = sadd.s32 %s138, 1
      %p142 = scmp.eq.s32.totalorder %s27, 1
      %p143 = scmp.ne.s32.totalorder %s138, %s140
      %p144 = scmp.eq.s32.totalorder %s27, 0
      %p145 = por %p143, %p144
      %p146 = scmp.ne.s32.totalorder %s138, %s140
      %p147 = scmp.eq.s32.totalorder %s32, 1
      %p148 = por %p146, %p147
      %p149 = scmp.ne.s32.totalorder %s140, %s141
      %p150 = scmp.eq.s32.totalorder %s32, 0
      %p151 = por %p149, %p150
      %p152 = scmp.ne.s32.totalorder %s140, %s141
      %p153 = scmp.eq.s32.totalorder %s33, 1
      %p154 = por %p152, %p153
      %p156 = scmp.ne.s32.totalorder %s141, %s155
      %p157 = scmp.eq.s32.totalorder %s33, 0
      %p158 = por %p156, %p157
      %s160 = sadd.s32 %s159, 1
      %p163 = scmp.eq.s32.totalorder %s27, 1
      %p164 = scmp.ne.s32.totalorder %s159, %s161
      %p165 = scmp.eq.s32.totalorder %s27, 0
      %p166 = por %p164, %p165
      %p167 = scmp.ne.s32.totalorder %s159, %s161
      %p168 = scmp.eq.s32.totalorder %s32, 1
      %p169 = por %p167, %p168
      %p170 = scmp.ne.s32.totalorder %s161, %s162
      %p171 = scmp.eq.s32.totalorder %s32, 0
      %p172 = por %p170, %p171
      %p173 = scmp.ne.s32.totalorder %s161, %s162
      %p174 = scmp.eq.s32.totalorder %s33, 1
      %p175 = por %p173, %p174
      %p177 = scmp.ne.s32.totalorder %s162, %s176
      %p178 = scmp.eq.s32.totalorder %s33, 0
      %p179 = por %p177, %p178
      %s181 = sadd.s32 %s180, 1
      %p184 = scmp.eq.s32.totalorder %s27, 1
      %p185 = scmp.ne.s32.totalorder %s180, %s182
      %p186 = scmp.eq.s32.totalorder %s27, 0
      %p187 = por %p185, %p186
      %p188 = scmp.ne.s32.totalorder %s180, %s182
      %p189 = scmp.eq.s32.totalorder %s32, 1
      %p190 = por %p188, %p189
      %p191 = scmp.ne.s32.totalorder %s182, %s183
      %p192 = scmp.eq.s32.totalorder %s32, 0
      %p193 = por %p191, %p192
      %p194 = scmp.ne.s32.totalorder %s182, %s183
      %p195 = scmp.eq.s32.totalorder %s33, 1
      %p196 = por %p194, %p195
      %p198 = scmp.ne.s32.totalorder %s183, %s197
      %p199 = scmp.eq.s32.totalorder %s33, 0
      %p200 = por %p198, %p199
      %s201 = ssub.s32 %s34, %s46
      %s202 = ssub.s32 %s35, %s42
      %s203 = sor.u32 %s201, %s202
      %p204 = scmp.eq.s32.totalorder %s203, 0
      %s206 = sadd.s32 %s205, 1
      %s207 = scalar_select %p204, %s205, %s206
      %p210 = pneg %p204
      %p211 = scmp.eq.s32.totalorder %s27, 1
      %p212 = por %p210, %p211
      %p213 = scmp.ne.s32.totalorder %s205, %s208
      %p214 = scmp.eq.s32.totalorder %s27, 0
      %p215 = por %p213, %p214
      %p216 = scmp.ne.s32.totalorder %s205, %s208
      %p217 = scmp.eq.s32.totalorder %s32, 1
      %p218 = por %p216, %p217
      %p219 = scmp.ne.s32.totalorder %s208, %s209
      %p220 = scmp.eq.s32.totalorder %s32, 0
      %p221 = por %p219, %p220
      %p222 = scmp.ne.s32.totalorder %s208, %s209
      %p223 = scmp.eq.s32.totalorder %s33, 1
      %p224 = por %p222, %p223
      %p226 = scmp.ne.s32.totalorder %s209, %s225
      %p227 = scmp.eq.s32.totalorder %s33, 0
      %p228 = por %p226, %p227
      %s229 = ssub.s32 %s34, %s46
      %s230 = ssub.s32 %s35, %s42
      %s231 = sor.u32 %s229, %s230
      %p232 = scmp.eq.s32.totalorder %s231, 0
      %s234 = sadd.s32 %s233, 1
      %s235 = scalar_select %p232, %s233, %s234
      %p238 = pneg %p232
      %p239 = scmp.eq.s32.totalorder %s27, 1
      %p240 = por %p238, %p239
      %p241 = scmp.ne.s32.totalorder %s233, %s236
      %p242 = scmp.eq.s32.totalorder %s27, 0
      %p243 = por %p241, %p242
      %p244 = scmp.ne.s32.totalorder %s233, %s236
      %p245 = scmp.eq.s32.totalorder %s32, 1
      %p246 = por %p244, %p245
      %p247 = scmp.ne.s32.totalorder %s236, %s237
      %p248 = scmp.eq.s32.totalorder %s32, 0
      %p249 = por %p247, %p248
      %p250 = scmp.ne.s32.totalorder %s236, %s237
      %p251 = scmp.eq.s32.totalorder %s33, 1
      %p252 = por %p250, %p251
      %p254 = scmp.ne.s32.totalorder %s237, %s253
      %p255 = scmp.eq.s32.totalorder %s33, 0
      %p256 = por %p254, %p255
      %s257 = ssub.s32 %s34, %s46
      %s258 = ssub.s32 %s35, %s42
      %s259 = sor.u32 %s257, %s258
      %p260 = scmp.eq.s32.totalorder %s259, 0
      %s262 = sadd.s32 %s261, 1
      %s263 = scalar_select %p260, %s261, %s262
      %p266 = pneg %p260
      %p267 = scmp.eq.s32.totalorder %s27, 1
      %p268 = por %p266, %p267
      %p269 = scmp.ne.s32.totalorder %s261, %s264
      %p270 = scmp.eq.s32.totalorder %s27, 0
      %p271 = por %p269, %p270
      %p272 = scmp.ne.s32.totalorder %s261, %s264
      %p273 = scmp.eq.s32.totalorder %s32, 1
      %p274 = por %p272, %p273
      %p275 = scmp.ne.s32.totalorder %s264, %s265
      %p276 = scmp.eq.s32.totalorder %s32, 0
      %p277 = por %p275, %p276
      %p278 = scmp.ne.s32.totalorder %s264, %s265
      %p279 = scmp.eq.s32.totalorder %s33, 1
      %p280 = por %p278, %p279
      %p282 = scmp.ne.s32.totalorder %s265, %s281
      %p283 = scmp.eq.s32.totalorder %s33, 0
      %p284 = por %p282, %p283
      %p285 = scmp.le.s32.totalorder 1, %s27
      %p286 = scmp.lt.s32.totalorder %s27, 3
      %p287 = pnand %p285, %p286
      %p288 = pneg %p287
      // Predicated region
      $region9: #{tpu_custom_call.1} parent=5 // pred_check
        _
      $region10: #{tpu_custom_call.1} parent=5 // pred_check_branch
        %290 = sbr.rel (%p287) target = $region12
      $region11: #{tpu_custom_call.1} parent=5 // pred_region
        %s291 = ssub.s32 %s27, 1
        // Predicated region
        $region13: #{tpu_custom_call.1} parent=11 // pred_check
          %p292 = pneg %p88
        $region14: #{tpu_custom_call.1} parent=11 // pred_check_branch
          %294 = sbr.rel (%p292) target = $region16
        $region15: #{tpu_custom_call.1} parent=11 // pred_region
          %s296 = ssub.s32 256, 256
          %297 = vsyncadd [#allocation6], %s296
          %s298 = sshll.u32 [#allocation5], 4
          %s299 = int_to_ptr.vmem [resolvable:$true] %s298
          %304 = dma.hbm_to_vmem [thread:$0]  %s1, 256, %s299, [#allocation6], 64, 64, 4
        $region16: #{tpu_custom_call.1} parent=11 // pred_fallthru
          _
        // Predicated region
        $region17: #{tpu_custom_call.1} parent=11 // pred_check
          %p305 = pneg %p109
        $region18: #{tpu_custom_call.1} parent=11 // pred_check_branch
          %307 = sbr.rel (%p305) target = $region20
        $region19: #{tpu_custom_call.1} parent=11 // pred_region
          %s309 = ssub.s32 256, 256
          %310 = vsyncadd [#allocation6], %s309
          %s311 = sshll.u32 [#allocation7], 4
          %s312 = int_to_ptr.vmem [resolvable:$true] %s311
          %317 = dma.hbm_to_vmem [thread:$0]  %s2, 256, %s312, [#allocation6], 64, 64, 4
        $region20: #{tpu_custom_call.1} parent=11 // pred_fallthru
          _
        // Predicated region
        $region21: #{tpu_custom_call.1} parent=11 // pred_check
          %p318 = pneg %p130
        $region22: #{tpu_custom_call.1} parent=11 // pred_check_branch
          %320 = sbr.rel (%p318) target = $region24
        $region23: #{tpu_custom_call.1} parent=11 // pred_region
          %s322 = ssub.s32 256, 256
          %323 = vsyncadd [#allocation9], %s322
          %s324 = sshll.u32 [#allocation8], 4
          %s325 = int_to_ptr.vmem [resolvable:$true] %s324
          %330 = dma.hbm_to_vmem [thread:$0]  %s3, 256, %s325, [#allocation9], 64, 64, 4
        $region24: #{tpu_custom_call.1} parent=11 // pred_fallthru
          _
        // Predicated region
        $region25: #{tpu_custom_call.1} parent=11 // pred_check
          %p331 = pneg %p151
        $region26: #{tpu_custom_call.1} parent=11 // pred_check_branch
          %333 = sbr.rel (%p331) target = $region28
        $region27: #{tpu_custom_call.1} parent=11 // pred_region
          _
        $region28: #{tpu_custom_call.1} parent=11 // pred_fallthru
          _
        // Predicated region
        $region29: #{tpu_custom_call.1} parent=11 // pred_check
          %p334 = pneg %p172
        $region30: #{tpu_custom_call.1} parent=11 // pred_check_branch
          %336 = sbr.rel (%p334) target = $region32
        $region31: #{tpu_custom_call.1} parent=11 // pred_region
          _
        $region32: #{tpu_custom_call.1} parent=11 // pred_fallthru
          _
        // Predicated region
        $region33: #{tpu_custom_call.1} parent=11 // pred_check
          %p337 = pneg %p193
        $region34: #{tpu_custom_call.1} parent=11 // pred_check_branch
          %339 = sbr.rel (%p337) target = $region36
        $region35: #{tpu_custom_call.1} parent=11 // pred_region
          _
        $region36: #{tpu_custom_call.1} parent=11 // pred_fallthru
          _
      $region12: #{tpu_custom_call.1} parent=5 // pred_fallthru
        _
      %p340 = scmp.lt.s32.totalorder %s27, 2
      // Predicated region
      $region37: #{tpu_custom_call.1} parent=5 // pred_check
        %p341 = pneg %p340
      $region38: #{tpu_custom_call.1} parent=5 // pred_check_branch
        %343 = sbr.rel (%p341) target = $region40
      $region39: #{tpu_custom_call.1} parent=5 // pred_region
        // Predicated region
        $region41: #{tpu_custom_call.1} parent=39 // pred_check
          %p344 = pneg %p61
        $region42: #{tpu_custom_call.1} parent=39 // pred_check_branch
          %346 = sbr.rel (%p344) target = $region44
        $region43: #{tpu_custom_call.1} parent=39 // pred_region
          %s347 = sand.u32 %s51, 1
          %s348 = scalar_lea.sflag [#allocation3], %s347
          %s349 = sand.u32 %s51, 1
          %s350 = smul.addr %s349, 4
          %s351 = scalar_lea.vmem [#allocation2], %s350
          %s353 = ssub.s32 64, 64
          %354 = vsyncadd %s348, %s353
          %s355 = sadd.s32 %s35, %s34
          %s356 = smul.addr %s355, 64
          %s357 = scalar_lea.hbm %s0, %s356
          %s359 = sshll.u32 %s351, 4
          %s360 = int_to_ptr.vmem [resolvable:$true] %s359
          %362 = dma.hbm_to_vmem [thread:$0]  %s357, 64, %s360, %s348
        $region44: #{tpu_custom_call.1} parent=39 // pred_fallthru
          _
      $region40: #{tpu_custom_call.1} parent=5 // pred_fallthru
        _
      %p363 = scmp.le.s32.totalorder 1, %s27
      %p364 = scmp.lt.s32.totalorder %s27, 3
      %p365 = pnand %p363, %p364
      %p366 = pneg %p365
      // Predicated region
      $region45: #{tpu_custom_call.1} parent=5 // pred_check
        _
      $region46: #{tpu_custom_call.1} parent=5 // pred_check_branch
        %368 = sbr.rel (%p365) target = $region48
      $region47: #{tpu_custom_call.1} parent=5 // pred_region
        %s369 = ssub.s32 %s27, 1
        %s370 = sand.u32 %s54, 1
        %s371 = scalar_lea.sflag [#allocation3], %s370
        %s372 = sand.u32 %s54, 1
        %s373 = smul.addr %s372, 4
        %s374 = scalar_lea.vmem [#allocation2], %s373
        // Predicated region
        $region49: #{tpu_custom_call.1} parent=47 // pred_check
          %p375 = pneg %p67
        $region50: #{tpu_custom_call.1} parent=47 // pred_check_branch
          %377 = sbr.rel (%p375) target = $region52
        $region51: #{tpu_custom_call.1} parent=47 // pred_region
          %378 = dma.done %s371, 64
        $region52: #{tpu_custom_call.1} parent=47 // pred_fallthru
          _
        // Predicated region
        $region53: #{tpu_custom_call.1} parent=47 // pred_check
          %p379 = pneg %p88
        $region54: #{tpu_custom_call.1} parent=47 // pred_check_branch
          %381 = sbr.rel (%p379) target = $region56
        $region55: #{tpu_custom_call.1} parent=47 // pred_region
          %382 = dma.done [#allocation6], 256
        $region56: #{tpu_custom_call.1} parent=47 // pred_fallthru
          _
        // Predicated region
        $region57: #{tpu_custom_call.1} parent=47 // pred_check
          %p383 = pneg %p109
        $region58: #{tpu_custom_call.1} parent=47 // pred_check_branch
          %385 = sbr.rel (%p383) target = $region60
        $region59: #{tpu_custom_call.1} parent=47 // pred_region
          %386 = dma.done [#allocation6], 256
        $region60: #{tpu_custom_call.1} parent=47 // pred_fallthru
          _
        // Predicated region
        $region61: #{tpu_custom_call.1} parent=47 // pred_check
          %p387 = pneg %p130
        $region62: #{tpu_custom_call.1} parent=47 // pred_check_branch
          %389 = sbr.rel (%p387) target = $region64
        $region63: #{tpu_custom_call.1} parent=47 // pred_region
          %390 = dma.done [#allocation9], 256
        $region64: #{tpu_custom_call.1} parent=47 // pred_fallthru
          _
        %s391 = sand.u32 %s54, 1
        %s392 = scalar_lea.sflag [#allocation3], %s391
        %s393 = sand.u32 %s54, 1
        %s394 = smul.addr %s393, 4
        %s395 = scalar_lea.vmem [#allocation2], %s394
        %p396 = pneg %p67
        %p397 = pneg %p64
        %p398 = pneg %p88
        %p399 = pneg %p85
        %p400 = pneg %p109
        %p401 = pneg %p106
        %p402 = pneg %p130
        %p403 = pneg %p127
        %p404 = pneg %p151
        %p405 = pneg %p148
        %p406 = pneg %p172
        %p407 = pneg %p169
        %p408 = pneg %p193
        %p409 = pneg %p190
        %p410 = pneg %p221
        %p411 = pneg %p218
        %s412 = sand.u32 %s208, 1
        %s413 = scalar_lea.sflag [#allocation4], %s412
        %s414 = sand.u32 %s208, 1
        %s415 = smul.addr %s414, 4
        %s416 = scalar_lea.vmem [#allocation10], %s415
        %p417 = pneg %p249
        %p418 = pneg %p246
        %p419 = scmp.lt.s32.totalorder %s36, 1
        %s420 = scalar_select %p419, %s36, 1
        %p421 = scmp.lt.s32.totalorder %s37, 0
        %s422 = scalar_select %p421, %s37, 0
        %s423 = smul.addr %s420, 4
        %s424 = sadd.s32 %s422, %s423
        %s425 = smul.addr %s424, 4
        %s426 = scalar_lea.vmem %s8, %s425
        %p427 = pneg %p277
        %p428 = pneg %p274
        %s429 = sand.u32 %s264, 1
        %s430 = scalar_lea.sflag [#allocation12], %s429
        %s431 = sand.u32 %s264, 1
        %s432 = smul.addr %s431, 4
        %s433 = scalar_lea.vmem [#allocation11], %s432
        %p434 = scmp.lt.s32.totalorder %s36, 1
        %s435 = scalar_select %p434, %s36, 1
        %p436 = scmp.lt.s32.totalorder %s37, 0
        %s437 = scalar_select %p436, %s37, 0
        %s438 = smul.addr %s435, 4
        %s439 = sadd.s32 %s437, %s438
        %s440 = smul.addr %s439, 4
        %s441 = scalar_lea.vmem %s8, %s440
        %v443 = vld [vmem:[%s374] sm:$0xf]
        %v444 = vld [vmem:[#allocation5] sm:$0xf]
        %v445 = vld [vmem:[#allocation5 + $0x4] sm:$0xf]
        %v446 = vld [vmem:[#allocation5 + $0x8] sm:$0xf]
        %v447 = vld [vmem:[#allocation5 + $0xc] sm:$0xf]
        %v448 = vld [vmem:[%s4] sm:$0x1]
        %v450 = vlaneseq
        %v451 = vshrl.u32 %v450, 7
        %v452 = vsub.s32 0, %v451
        %v453 = vrot.slane %v448, %v452
        %v459 = vunpack.c.l.b16 %v444
        %v460 = vunpack.c.l.b16 %v445
        %v461 = vunpack.c.l.b16 %v446
        %v462 = vunpack.c.l.b16 %v447
        %v463 = vpack.c.b16 %v460, %v459
        %v464 = vpack.c.b16 %v462, %v461
        %vm467 = vcmask 261120
        %v469 = vsel %vm467, %v443, 0
        %471 = vmatprep.subr.bf16.mxu0 0
        %472 = vmatpush1.bf16.msra.mxu0 0
        %473 = vmatprep.subr.bf16.mxu0 0
        %474 = vmatpush1.bf16.msra.mxu0 0
        %475 = vmatprep.subr.bf16.mxu0 0
        %476 = vmatpush1.bf16.msra.mxu0 0
        %477 = vmatprep.subr.bf16.mxu0 0
        %478 = vmatpush1.bf16.msra.mxu0 0
        %479 = vmatprep.subr.bf16.mxu0 0
        %480 = vmatpush1.bf16.msra.mxu0 0
        %481 = vmatprep.subr.bf16.mxu0 0
        %482 = vmatpush1.bf16.msra.mxu0 0
        %483 = vmatprep.subr.bf16.mxu0 0
        %484 = vmatpush1.bf16.msra.mxu0 %v464
        %485 = vmatprep.subr.bf16.mxu0 0
        %486 = vmatpush1.bf16.msra.mxu0 %v463
        %487 = vmatprep.subr.bf16.mxu0 0
        %488 = vmatpush2.bf16.msra.mxu0 0
        %489 = vmatprep.subr.bf16.mxu0 0
        %490 = vmatpush2.bf16.msra.mxu0 0
        %491 = vmatprep.subr.bf16.mxu0 0
        %492 = vmatpush2.bf16.msra.mxu0 0
        %493 = vmatprep.subr.bf16.mxu0 0
        %494 = vmatpush2.bf16.msra.mxu0 0
        %495 = vmatprep.subr.bf16.mxu0 0
        %496 = vmatpush2.bf16.msra.mxu0 0
        %497 = vmatprep.subr.bf16.mxu0 0
        %498 = vmatpush2.bf16.msra.mxu0 0
        %499 = vmatprep.subr.bf16.mxu0 0
        %500 = vmatpush2.bf16.msra.mxu0 0
        %501 = vmatprep.subr.bf16.mxu0 0
        %502 = vmatpush2.bf16.msra.mxu0 0
        %503 = vmatprep.mubr.bf16.mxu0 0
        %504 = vmatmul.mubr.bf16.gmra.mxu0 %v469
        %v505 = vpop.f32.mrf.mxu0
        %v506 = vadd.f32 %v453, %v505
        %v507 = vpop.f32.mrf.mxu0
        %v508 = vpop.f32.mrf.mxu0
        %v509 = vpop.f32.mrf.mxu0
        %510 = vdwg.mxu0
        %v511 = vld [vmem:[#allocation7] sm:$0xf]
        %v512 = vld [vmem:[#allocation7 + $0x4] sm:$0xf]
        %v513 = vld [vmem:[#allocation7 + $0x8] sm:$0xf]
        %v514 = vld [vmem:[#allocation7 + $0xc] sm:$0xf]
        %v515 = vld [vmem:[%s5] sm:$0x1]
        %v517 = vlaneseq
        %v518 = vshrl.u32 %v517, 7
        %v519 = vsub.s32 0, %v518
        %v520 = vrot.slane %v515, %v519
        %v526 = vunpack.c.l.b16 %v511
        %v527 = vunpack.c.l.b16 %v512
        %v528 = vunpack.c.l.b16 %v513
        %v529 = vunpack.c.l.b16 %v514
        %v530 = vpack.c.b16 %v527, %v526
        %v531 = vpack.c.b16 %v529, %v528
        %534 = vmatprep.subr.bf16.mxu0 0
        %535 = vmatpush1.bf16.msra.mxu0 0
        %536 = vmatprep.subr.bf16.mxu0 0
        %537 = vmatpush1.bf16.msra.mxu0 0
        %538 = vmatprep.subr.bf16.mxu0 0
        %539 = vmatpush1.bf16.msra.mxu0 0
        %540 = vmatprep.subr.bf16.mxu0 0
        %541 = vmatpush1.bf16.msra.mxu0 0
        %542 = vmatprep.subr.bf16.mxu0 0
        %543 = vmatpush1.bf16.msra.mxu0 0
        %544 = vmatprep.subr.bf16.mxu0 0
        %545 = vmatpush1.bf16.msra.mxu0 0
        %546 = vmatprep.subr.bf16.mxu0 0
        %547 = vmatpush1.bf16.msra.mxu0 %v531
        %548 = vmatprep.subr.bf16.mxu0 0
        %549 = vmatpush1.bf16.msra.mxu0 %v530
        %550 = vmatprep.subr.bf16.mxu0 0
        %551 = vmatpush2.bf16.msra.mxu0 0
        %552 = vmatprep.subr.bf16.mxu0 0
        %553 = vmatpush2.bf16.msra.mxu0 0
        %554 = vmatprep.subr.bf16.mxu0 0
        %555 = vmatpush2.bf16.msra.mxu0 0
        %556 = vmatprep.subr.bf16.mxu0 0
        %557 = vmatpush2.bf16.msra.mxu0 0
        %558 = vmatprep.subr.bf16.mxu0 0
        %559 = vmatpush2.bf16.msra.mxu0 0
        %560 = vmatprep.subr.bf16.mxu0 0
        %561 = vmatpush2.bf16.msra.mxu0 0
        %562 = vmatprep.subr.bf16.mxu0 0
        %563 = vmatpush2.bf16.msra.mxu0 0
        %564 = vmatprep.subr.bf16.mxu0 0
        %565 = vmatpush2.bf16.msra.mxu0 0
        %566 = vmatprep.mubr.bf16.mxu0 0
        %567 = vmatmul.mubr.bf16.gmra.mxu0 %v469
        %v568 = vpop.f32.mrf.mxu0
        %v569 = vadd.f32 %v520, %v568
        %v570 = vpop.f32.mrf.mxu0
        %v571 = vpop.f32.mrf.mxu0
        %v572 = vpop.f32.mrf.mxu0
        %573 = vdwg.mxu0
        %v574 = vld [vmem:[#allocation8] sm:$0xf]
        %v575 = vld [vmem:[#allocation8 + $0x4] sm:$0xf]
        %v576 = vld [vmem:[#allocation8 + $0x8] sm:$0xf]
        %v577 = vld [vmem:[#allocation8 + $0xc] sm:$0xf]
        %v578 = vld [vmem:[%s6] sm:$0x1]
        %v580 = vlaneseq
        %v581 = vshrl.u32 %v580, 7
        %v582 = vsub.s32 0, %v581
        %v583 = vrot.slane %v578, %v582
        %v589 = vunpack.c.l.b16 %v574
        %v590 = vunpack.c.l.b16 %v575
        %v591 = vunpack.c.l.b16 %v576
        %v592 = vunpack.c.l.b16 %v577
        %v593 = vpack.c.b16 %v590, %v589
        %v594 = vpack.c.b16 %v592, %v591
        %597 = vmatprep.subr.bf16.mxu0 0
        %598 = vmatpush1.bf16.msra.mxu0 0
        %599 = vmatprep.subr.bf16.mxu0 0
        %600 = vmatpush1.bf16.msra.mxu0 0
        %601 = vmatprep.subr.bf16.mxu0 0
        %602 = vmatpush1.bf16.msra.mxu0 0
        %603 = vmatprep.subr.bf16.mxu0 0
        %604 = vmatpush1.bf16.msra.mxu0 0
        %605 = vmatprep.subr.bf16.mxu0 0
        %606 = vmatpush1.bf16.msra.mxu0 0
        %607 = vmatprep.subr.bf16.mxu0 0
        %608 = vmatpush1.bf16.msra.mxu0 0
        %609 = vmatprep.subr.bf16.mxu0 0
        %610 = vmatpush1.bf16.msra.mxu0 %v594
        %611 = vmatprep.subr.bf16.mxu0 0
        %612 = vmatpush1.bf16.msra.mxu0 %v593
        %613 = vmatprep.subr.bf16.mxu0 0
        %614 = vmatpush2.bf16.msra.mxu0 0
        %615 = vmatprep.subr.bf16.mxu0 0
        %616 = vmatpush2.bf16.msra.mxu0 0
        %617 = vmatprep.subr.bf16.mxu0 0
        %618 = vmatpush2.bf16.msra.mxu0 0
        %619 = vmatprep.subr.bf16.mxu0 0
        %620 = vmatpush2.bf16.msra.mxu0 0
        %621 = vmatprep.subr.bf16.mxu0 0
        %622 = vmatpush2.bf16.msra.mxu0 0
        %623 = vmatprep.subr.bf16.mxu0 0
        %624 = vmatpush2.bf16.msra.mxu0 0
        %625 = vmatprep.subr.bf16.mxu0 0
        %626 = vmatpush2.bf16.msra.mxu0 0
        %627 = vmatprep.subr.bf16.mxu0 0
        %628 = vmatpush2.bf16.msra.mxu0 0
        %629 = vmatprep.mubr.bf16.mxu0 0
        %630 = vmatmul.mubr.bf16.gmra.mxu0 %v469
        %v631 = vpop.f32.mrf.mxu0
        %v632 = vadd.f32 %v583, %v631
        %v633 = vpop.f32.mrf.mxu0
        %v634 = vpop.f32.mrf.mxu0
        %v635 = vpop.f32.mrf.mxu0
        %636 = vdwg.mxu0
        %v637 = vpack.c.bf16 %v506, %v506
        %vm638 = vcmask 257024
        %639 = vst.msk [vmem:[%s416] sm:$0xf] %vm638, %v637
        %640 = vxpose.xlu0.b32.start [1/16] %v569, 128
        %641 = vxpose.xlu0.b32.cont [2/16] 0.0, 128
        %642 = vxpose.xlu0.b32.cont [3/16] 0.0, 128
        %643 = vxpose.xlu0.b32.cont [4/16] 0.0, 128
        %644 = vxpose.xlu0.b32.cont [5/16] 0.0, 128
        %645 = vxpose.xlu0.b32.cont [6/16] 0.0, 128
        %646 = vxpose.xlu0.b32.cont [7/16] 0.0, 128
        %647 = vxpose.xlu0.b32.cont [8/16] 0.0, 128
        %648 = vxpose.xlu0.b32.cont [9/16] 0.0, 128
        %649 = vxpose.xlu0.b32.cont [10/16] 0.0, 128
        %650 = vxpose.xlu0.b32.cont [11/16] 0.0, 128
        %651 = vxpose.xlu0.b32.cont [12/16] 0.0, 128
        %652 = vxpose.xlu0.b32.cont [13/16] 0.0, 128
        %653 = vxpose.xlu0.b32.cont [14/16] 0.0, 128
        %654 = vxpose.xlu0.b32.cont [15/16] 0.0, 128
        %655 = vxpose.xlu0.b32.end [16/16] 0.0, 128
        %v656 = vpop.trf.xlu0
        %v657 = vpop.trf.xlu0
        %v658 = vpop.trf.xlu0
        %v659 = vpop.trf.xlu0
        %v660 = vpop.trf.xlu0
        %v661 = vpop.trf.xlu0
        %v662 = vpop.trf.xlu0
        %v663 = vpop.trf.xlu0
        %v664 = vpop.trf.xlu0
        %v665 = vpop.trf.xlu0
        %v666 = vpop.trf.xlu0
        %v667 = vpop.trf.xlu0
        %v668 = vpop.trf.xlu0
        %v669 = vpop.trf.xlu0
        %v670 = vpop.trf.xlu0
        %v671 = vpop.trf.xlu0
        %v672 = vpack.c.bf16 %v657, %v656
        %v673 = vpack.c.bf16 %v659, %v658
        %v676 = vunpack.c.l.b16 %v672
        %v677 = vunpack.c.h.b16 %v672
        %v678 = vunpack.c.l.b16 %v673
        %v679 = vunpack.c.h.b16 %v673
        %v680 = vpack.c.b16 %v676, %v676
        %v681 = vpack.c.b16 %v677, %v677
        %v682 = vpack.c.b16 %v678, %v678
        %v683 = vpack.c.b16 %v679, %v679
        %vm688 = vcmask 60416
        %689 = vst.msk [vmem:[%s441] sm:$0xf] %vm688, %v680
        %690 = vst.msk [vmem:[%s441 + $0x4] sm:$0xf] %vm688, %v681
        %691 = vst.msk [vmem:[%s441 + $0x8] sm:$0xf] %vm688, %v682
        %692 = vst.msk [vmem:[%s441 + $0xc] sm:$0xf] %vm688, %v683
        %v693 = vpack.c.bf16 %v632, %v632
        %694 = vst.msk [vmem:[%s433] sm:$0xf] %vm638, %v693
        %s695 = sand.u32 %s208, 1
        %s696 = scalar_lea.sflag [#allocation4], %s695
        %s697 = sand.u32 %s208, 1
        %s698 = smul.addr %s697, 4
        %s699 = scalar_lea.vmem [#allocation10], %s698
        %p700 = scmp.lt.s32.totalorder %s36, 1
        %s701 = scalar_select %p700, %s36, 1
        %p702 = scmp.lt.s32.totalorder %s37, 0
        %s703 = scalar_select %p702, %s37, 0
        %s704 = smul.addr %s701, 4
        %s705 = sadd.s32 %s703, %s704
        %s706 = smul.addr %s705, 4
        %s707 = scalar_lea.vmem %s8, %s706
        %s708 = sand.u32 %s264, 1
        %s709 = scalar_lea.sflag [#allocation12], %s708
        %s710 = sand.u32 %s264, 1
        %s711 = smul.addr %s710, 4
        %s712 = scalar_lea.vmem [#allocation11], %s711
        // Predicated region
        $region65: #{tpu_custom_call.1} parent=47 // pred_check
          %p713 = pneg %p218
        $region66: #{tpu_custom_call.1} parent=47 // pred_check_branch
          %715 = sbr.rel (%p713) target = $region68
        $region67: #{tpu_custom_call.1} parent=47 // pred_region
          %s717 = ssub.s32 64, 64
          %718 = vsyncadd %s696, %s717
          %s719 = sadd.s32 %s37, %s36
          %s720 = smul.addr %s719, 64
          %s721 = scalar_lea.hbm %s7, %s720
          %s723 = sshll.u32 %s699, 4
          %s724 = int_to_ptr.vmem [resolvable:$true] %s723
          %726 = dma.vmem_to_hbm [thread:$0]  %s724, 64, %s721, %s696
        $region68: #{tpu_custom_call.1} parent=47 // pred_fallthru
          _
        // Predicated region
        $region69: #{tpu_custom_call.1} parent=47 // pred_check
          %p727 = pneg %p246
        $region70: #{tpu_custom_call.1} parent=47 // pred_check_branch
          %729 = sbr.rel (%p727) target = $region72
        $region71: #{tpu_custom_call.1} parent=47 // pred_region
          _
        $region72: #{tpu_custom_call.1} parent=47 // pred_fallthru
          _
        // Predicated region
        $region73: #{tpu_custom_call.1} parent=47 // pred_check
          %p730 = pneg %p274
        $region74: #{tpu_custom_call.1} parent=47 // pred_check_branch
          %732 = sbr.rel (%p730) target = $region76
        $region75: #{tpu_custom_call.1} parent=47 // pred_region
          %s734 = ssub.s32 64, 64
          %735 = vsyncadd %s709, %s734
          %s736 = sadd.s32 %s37, %s36
          %s737 = smul.addr %s736, 64
          %s738 = scalar_lea.hbm %s9, %s737
          %s740 = sshll.u32 %s712, 4
          %s741 = int_to_ptr.vmem [resolvable:$true] %s740
          %743 = dma.vmem_to_hbm [thread:$0]  %s741, 64, %s738, %s709
        $region76: #{tpu_custom_call.1} parent=47 // pred_fallthru
          _
      $region48: #{tpu_custom_call.1} parent=5 // pred_fallthru
        _
      %p744 = scmp.le.s32.totalorder 2, %s27
      // Predicated region
      $region77: #{tpu_custom_call.1} parent=5 // pred_check
        %p745 = pneg %p744
      $region78: #{tpu_custom_call.1} parent=5 // pred_check_branch
        %747 = sbr.rel (%p745) target = $region80
      $region79: #{tpu_custom_call.1} parent=5 // pred_region
        %s748 = ssub.s32 %s27, 2
        // Predicated region
        $region81: #{tpu_custom_call.1} parent=79 // pred_check
          %p749 = pneg %p224
        $region82: #{tpu_custom_call.1} parent=79 // pred_check_branch
          %751 = sbr.rel (%p749) target = $region84
        $region83: #{tpu_custom_call.1} parent=79 // pred_region
          %s752 = sand.u32 %s209, 1
          %s753 = scalar_lea.sflag [#allocation4], %s752
          %s754 = sand.u32 %s209, 1
          %s755 = smul.addr %s754, 4
          %s756 = scalar_lea.vmem [#allocation10], %s755
          %757 = dma.done %s753, 64
        $region84: #{tpu_custom_call.1} parent=79 // pred_fallthru
          _
        // Predicated region
        $region85: #{tpu_custom_call.1} parent=79 // pred_check
          %p758 = pneg %p252
        $region86: #{tpu_custom_call.1} parent=79 // pred_check_branch
          %760 = sbr.rel (%p758) target = $region88
        $region87: #{tpu_custom_call.1} parent=79 // pred_region
          %p761 = scmp.lt.s32.totalorder %s38, 1
          %s762 = scalar_select %p761, %s38, 1
          %p763 = scmp.lt.s32.totalorder %s39, 0
          %s764 = scalar_select %p763, %s39, 0
          %s765 = smul.addr %s762, 4
          %s766 = sadd.s32 %s764, %s765
          %s767 = smul.addr %s766, 4
          %s768 = scalar_lea.vmem %s8, %s767
        $region88: #{tpu_custom_call.1} parent=79 // pred_fallthru
          _
        // Predicated region
        $region89: #{tpu_custom_call.1} parent=79 // pred_check
          %p769 = pneg %p280
        $region90: #{tpu_custom_call.1} parent=79 // pred_check_branch
          %771 = sbr.rel (%p769) target = $region92
        $region91: #{tpu_custom_call.1} parent=79 // pred_region
          %s772 = sand.u32 %s265, 1
          %s773 = scalar_lea.sflag [#allocation12], %s772
          %s774 = sand.u32 %s265, 1
          %s775 = smul.addr %s774, 4
          %s776 = scalar_lea.vmem [#allocation11], %s775
          %777 = dma.done %s773, 64
        $region92: #{tpu_custom_call.1} parent=79 // pred_fallthru
          _
      $region80: #{tpu_custom_call.1} parent=5 // pred_fallthru
        _
    $region6: #{tpu_custom_call.1} parent=1 // loop_footer
      %s31 = sadd.s32 1, %s27
    $region7: #{tpu_custom_call.1} parent=1 // loop_footer_branch
      %26 = sbr.rel target = $region3
    $region8: #{tpu_custom_call.1} parent=1 // loop_exit
      _
    %778 = vsyncpa [#allocation3], 1
    %s779 = scalar_lea.sflag [#allocation3], 1
    %780 = vsyncpa %s779, 1
    %781 = vsyncpa [#allocation6], 1
    %782 = vsyncpa [#allocation9], 1
    %783 = vsyncpa [#allocation4], 1
    %s784 = scalar_lea.sflag [#allocation4], 1
    %785 = vsyncpa %s784, 1
    %786 = vsyncpa [#allocation12], 1
    %s787 = scalar_lea.sflag [#allocation12], 1
    %788 = vsyncpa %s787, 1

</llo_original>
